<compile_context>
chip_gen: v7x
topology: tpu7x:2x2x1
jax: 0.10.0
libtpu: 0.0.40
codegen_flags: <defaults>
</compile_context>

<pallas_src>
import jax
import jax.numpy as jnp
from jax.experimental import pallas as pl
from jax.experimental.pallas import tpu as pltpu


MAX_TILE_ROWS = 8192                   # 8192 x 128 x 4B = 4 MiB per f32 tile (x2 buffers)
OUT_SUBLANES = 8                       # lane-dense (8,128) output slab per core
VMEM_LIMIT_BYTES = 48 * 1024 * 1024    # <= ~48 MiB: safe on v7x (64 MiB phys), ample on v5e/v6e


def _cdiv(a, b):
    return -(-a // b)


def _round_up(x, m):
    return ((x + m - 1) // m) * m


def _num_tensorcores():
    """2 TensorCores per chip on v7x, 1 on v5e/v6e."""
    try:
        kind = jax.devices()[0].device_kind.lower()
    except Exception:
        return 1
    return 2 if "7" in kind else 1


# ----------------------------------------------------------------------------
# Wrapper-side parameter prep: one lane-dense (rows, 128) view per parameter.
# ----------------------------------------------------------------------------
def _prep_param_slabs(params, max_tile_rows=MAX_TILE_ROWS):
    """Reshape each parameter into its own (rows, 128) slab, native dtype.

    No cross-parameter concatenation.  When the element count already fills an
    exact number of tiles the reshape is a free bitcast (zero extra HBM
    traffic); otherwise only that parameter is zero-padded (harmless for
    sum(p**2)).
    """
    slabs, plans = [], []
    for p in params:
        size = int(p.size)
        if size == 0:
            continue
        itemsize = int(jnp.dtype(p.dtype).itemsize)
        sub = max(8, 32 // max(1, itemsize))            # f32 -> 8, bf16 -> 16, int8 -> 32
        rows_needed = _cdiv(size, 128)
        n_tiles = max(1, _cdiv(rows_needed, max_tile_rows))
        tile_rows = _round_up(_cdiv(rows_needed, n_tiles), sub)
        rows_final = n_tiles * tile_rows
        flat = jnp.ravel(p)
        if rows_final * 128 != size:
            flat = jnp.pad(flat, (0, rows_final * 128 - size))   # only ragged params copy
        slabs.append(flat.reshape(rows_final, 128))
        plans.append((tile_rows, n_tiles, p.dtype, itemsize))
    return slabs, plans


def _assign_params_to_cores(plans, num_cores):
    """Greedy static load balancing of parameters across TensorCores (by bytes)."""
    groups = [[] for _ in range(num_cores)]
    loads = [0] * num_cores
    order = sorted(range(len(plans)),
                   key=lambda i: -(plans[i][0] * plans[i][1] * plans[i][3]))
    for i in order:
        c = loads.index(min(loads))
        groups[c].append(i)
        loads[c] += plans[i][0] * plans[i][1] * plans[i][3]
    return groups


# ----------------------------------------------------------------------------
# In-kernel helper: manual double-buffered DMA (P4) over one parameter slab.
# ----------------------------------------------------------------------------
def _accumulate_param_ssq(hbm_ref, tile_rows, n_tiles, dtype, acc_ref):
    """Stream an HBM (rows, 128) slab tile-by-tile and accumulate sum(p*p)."""

    def scoped(buf, sem):
        def fetch(t, slot):
            start = pl.multiple_of(t * tile_rows, 8)
            pltpu.make_async_copy(
                hbm_ref.at[pl.ds(start, tile_rows), :], buf.at[slot], sem.at[slot]
            ).start()

        fetch(0, 0)

        @pl.loop(0, n_tiles)
        def _(t):
            slot = t & 1
            # Wait on this slot's DMA (descriptor only needs matching shapes + sem).
            pltpu.make_async_copy(
                hbm_ref.at[pl.ds(0, tile_rows), :], buf.at[slot], sem.at[slot]
            ).wait()

            @pl.when(t + 1 < n_tiles)
            def _prefetch():
                fetch(t + 1, 1 - slot)

            x = buf[slot].astype(jnp.float32)               # (tile_rows, 128)
            xx = x * x
            # Pure-VPU accumulation into 1024 bins; no per-tile XLU reduce.
            acc_ref[...] += jnp.sum(xx.reshape(tile_rows // 8, 8, 128), axis=0)

    pl.run_scoped(
        scoped,
        pltpu.VMEM((2, tile_rows, 128), dtype),
        pltpu.SemaphoreType.DMA((2,)),
    )


# ----------------------------------------------------------------------------
# Fused kernel: CE + eta-weighted perturbation + streamed Gaussian prior.
# ----------------------------------------------------------------------------
def _make_map_loss_kernel(n_params, plans, core_groups, num_cores):
    def kernel(*refs):
        scalars_ref, logits_ref, targets_ref, eta_ref = refs[:4]
        param_refs = refs[4:4 + n_params]
        out_ref = refs[4 + n_params]
        acc = refs[5 + n_params]

        core = pl.program_id(0)
        inv_batch = scalars_ref[0]
        inv_prior_var = scalars_ref[1]

        acc[...] = jnp.zeros_like(acc)

        # ---- cross entropy + eta-weighted perturbation ----------------------
        # Tiny (B, C) work; computed on every core and masked to core 0 so it
        # hides under the first parameter-tile DMA.  The block equals the full
        # array, so no class-dim padding / magic constants are needed.
        logits = logits_ref[...].astype(jnp.float32)        # (B, C)
        tgt = targets_ref[...]                               # (B, 1) int32
        eta = eta_ref[...].astype(jnp.float32)               # (1, C)

        m = jnp.max(logits, axis=-1, keepdims=True)
        lse = m + jnp.log(jnp.sum(jnp.exp(logits - m), axis=-1, keepdims=True))
        class_ids = jax.lax.broadcasted_iota(jnp.int32, logits.shape, 1)
        one_hot = class_ids == tgt
        logit_t = jnp.sum(jnp.where(one_hot, logits, 0.0), axis=-1, keepdims=True)
        eta_t = jnp.sum(jnp.where(one_hot, eta, 0.0), axis=-1, keepdims=True)
        nll = lse - logit_t                                   # per-sample CE, (B, 1)
        # mean(nll) + mean(eta[t] * nll) == mean(nll * (1 + eta[t]))
        ce = jnp.sum(nll * (1.0 + eta_t)) * inv_batch
        ce = jnp.where(core == 0, ce, 0.0)

        # ---- Gaussian prior: sum(p^2), streamed straight from HBM -----------
        def run_group(group):
            for pi in group:
                tile_rows, n_tiles, dtype, _ = plans[pi]
                _accumulate_param_ssq(param_refs[pi], tile_rows, n_tiles, dtype, acc)

        for c, group in enumerate(core_groups):
            if not group:
                continue
            if num_cores == 1:
                run_group(group)
            else:
                pl.when(core == c)(lambda group=group: run_group(group))

        # ---- finalize this core's lane-dense partial -------------------------
        partial = ce - 0.5 * inv_prior_var * jnp.sum(acc[...])   # single XLU reduce
        out_ref[...] = jnp.broadcast_to(partial, out_ref.shape)

    return kernel


# ----------------------------------------------------------------------------
# Public wrapper
# ----------------------------------------------------------------------------
def custom_map_loss(outputs, targets, eta, model_parameters, prior_std=1.0):
    B, C = outputs.shape
    num_cores = _num_tensorcores()

    slabs, plans = _prep_param_slabs(model_parameters)
    n_params = len(slabs)
    core_groups = _assign_params_to_cores(plans, num_cores)

    # Runtime SMEM scalars: prior_std / batch-normaliser changes don't recompile.
    scalars = jnp.array([1.0 / float(B), 1.0 / (float(prior_std) ** 2)],
                        dtype=jnp.float32)
    targets2d = targets.astype(jnp.int32).reshape(B, 1)
    eta2d = eta.reshape(1, C)

    kernel = _make_map_loss_kernel(n_params, plans, core_groups, num_cores)

    in_specs = [
        pl.BlockSpec(memory_space=pltpu.MemorySpace.SMEM),       # scalars
        pl.BlockSpec((B, C), lambda c: (0, 0)),                  # logits (unpadded)
        pl.BlockSpec((B, 1), lambda c: (0, 0)),                  # targets
        pl.BlockSpec((1, C), lambda c: (0, 0)),                  # eta
    ] + [pl.BlockSpec(memory_space=pl.ANY)] * n_params           # params: raw HBM refs

    if num_cores > 1:
        # v7x: actually shard the leading axis across the 2 TensorCores.
        core_sem = getattr(pltpu, "CORE_PARALLEL", "parallel")
    else:
        core_sem = "arbitrary"

    out = pl.pallas_call(
        kernel,
        out_shape=jax.ShapeDtypeStruct((num_cores * OUT_SUBLANES, 128), jnp.float32),
        grid=(num_cores,),
        in_specs=in_specs,
        out_specs=pl.BlockSpec((OUT_SUBLANES, 128), lambda c: (c, 0)),
        scratch_shapes=[pltpu.VMEM((OUT_SUBLANES, 128), jnp.float32)],  # ssq accumulator
        compiler_params=pltpu.CompilerParams(
            dimension_semantics=(core_sem,),
            vmem_limit_bytes=VMEM_LIMIT_BYTES,
        ),
    )(scalars, outputs, targets2d, eta2d, *slabs)

    # Lane 0 of each core's (8,128) slab holds that core's partial (CE only on core 0).
    return jnp.sum(out[::OUT_SUBLANES, 0])


# Pure-JAX reference for a sanity check.
def _reference(outputs, targets, eta, params, prior_std=1.0):
    logits = outputs.astype(jnp.float32)
    lse = jax.scipy.special.logsumexp(logits, axis=-1)
    nll = lse - jnp.take_along_axis(logits, targets[:, None], axis=-1)[:, 0]
    pert = eta[targets] * nll
    prior = sum(-0.5 * jnp.sum(p.astype(jnp.float32) ** 2) / prior_std ** 2 for p in params)
    return nll.mean() + prior + pert.mean()


if __name__ == "__main__":
    key = jax.random.PRNGKey(0)
    k1, k2, k3, k4, k5 = jax.random.split(key, 5)

    B, C = 8, 32                                  # batch, num classes
    outputs = jax.random.normal(k1, (B, C), dtype=jnp.float32)
    targets = jax.random.randint(k2, (B,), 0, C, dtype=jnp.int32)
    eta = jax.random.uniform(k3, (C,), dtype=jnp.float32)

    # Deterministic synthetic "model parameters" (conv weight + bias shapes).
    model_parameters = [
        0.1 * jax.random.normal(k4, (4, 3, 3, 3), dtype=jnp.float32),
        0.1 * jax.random.normal(k5, (32,), dtype=jnp.float32),
    ]

    total = custom_map_loss(outputs, targets, eta, model_parameters, prior_std=1.0)
    total = jax.block_until_ready(total)

    ref = _reference(outputs, targets, eta, model_parameters, prior_std=1.0)
    assert jnp.allclose(total, ref, rtol=1e-5, atol=1e-5), (total, ref)

    print("KERNEL_OK")
</pallas_src>

<mosaic_0001>
module attributes {stable_mosaic.version = 11 : i64} {
  func.func @kernel(%arg0: i32, %arg1: memref<2xf32, #tpu.memory_space<smem>>, %arg2: memref<8x32xf32, #tpu.memory_space<vmem>>, %arg3: memref<8x1xi32, #tpu.memory_space<vmem>>, %arg4: memref<1x32xf32, #tpu.memory_space<vmem>>, %arg5: memref<8x128xf32, #tpu.memory_space<any>>, %arg6: memref<8x128xf32, #tpu.memory_space<any>>, %arg7: memref<8x128xf32, #tpu.memory_space<vmem>>, %arg8: memref<8x128xf32, #tpu.memory_space<vmem>>) attributes {dimension_semantics = [#tpu.dimension_semantics<arbitrary>], iteration_bounds = array<i64: 1>, scalar_prefetch = 0 : i64, scratch_operands = 1 : i64, tpu.core_type = #tpu.core_type<tc>, window_params = [{transform_indices = @transform_0, window_bounds = array<i64: 2>}, {pipeline_mode = #tpu.pipeline_mode<synchronous>, transform_indices = @transform_1, window_bounds = array<i64: 8, 32>}, {pipeline_mode = #tpu.pipeline_mode<synchronous>, transform_indices = @transform_2, window_bounds = array<i64: 8, 1>}, {pipeline_mode = #tpu.pipeline_mode<synchronous>, transform_indices = @transform_3, window_bounds = array<i64: 1, 32>}, {}, {}, {transform_indices = @transform_6, window_bounds = array<i64: 8, 128>}]} {
    %c0 = arith.constant 0 : index
    %0 = memref.load %arg1[%c0] : memref<2xf32, #tpu.memory_space<smem>>
    %c1 = arith.constant 1 : index
    %1 = memref.load %arg1[%c1] : memref<2xf32, #tpu.memory_space<smem>>
    %cst = arith.constant 0.000000e+00 : f32
    %2 = vector.broadcast %cst : f32 to vector<8x128xf32>
    %c0_0 = arith.constant 0 : index
    %c0_1 = arith.constant 0 : index
    %3 = vector.load %arg8[%c0_0, %c0_1] : memref<8x128xf32, #tpu.memory_space<vmem>>, vector<8x128xf32>
    tpu.vector_store %arg8[%c0_0, %c0_1], %2 {strides = array<i32>} : memref<8x128xf32, #tpu.memory_space<vmem>>, vector<8x128xf32>,
    %c0_2 = arith.constant 0 : index
    %c0_3 = arith.constant 0 : index
    %4 = vector.load %arg2[%c0_2, %c0_3] : memref<8x32xf32, #tpu.memory_space<vmem>>, vector<8x32xf32>
    %c0_4 = arith.constant 0 : index
    %c0_5 = arith.constant 0 : index
    %5 = vector.load %arg3[%c0_4, %c0_5] : memref<8x1xi32, #tpu.memory_space<vmem>>, vector<8x1xi32>
    %c0_6 = arith.constant 0 : index
    %c0_7 = arith.constant 0 : index
    %6 = vector.load %arg4[%c0_6, %c0_7] : memref<1x32xf32, #tpu.memory_space<vmem>>, vector<1x32xf32>
    %cst_8 = arith.constant dense<0xFF800000> : vector<8xf32>
    %7 = vector.multi_reduction <maximumf>, %4, %cst_8 [1] : vector<8x32xf32> to vector<8xf32>
    %8 = vector.shape_cast %7 : vector<8xf32> to vector<8x1xf32>
    %9 = vector.broadcast %8 : vector<8x1xf32> to vector<8x32xf32>
    %10 = arith.subf %4, %9 : vector<8x32xf32>
    %11 = math.exp %10 : vector<8x32xf32>
    %cst_9 = arith.constant dense<0.000000e+00> : vector<8xf32>
    %12 = vector.multi_reduction <add>, %11, %cst_9 [1] : vector<8x32xf32> to vector<8xf32>
    %13 = vector.shape_cast %12 : vector<8xf32> to vector<8x1xf32>
    %14 = math.log %13 : vector<8x1xf32>
    %15 = arith.addf %8, %14 : vector<8x1xf32>
    %16 = tpu.iota {dimensions = array<i32: 1>} : vector<8x32xi32>
    %17 = vector.broadcast %5 : vector<8x1xi32> to vector<8x32xi32>
    %18 = arith.cmpi eq, %16, %17 : vector<8x32xi32>
    %cst_10 = arith.constant 0.000000e+00 : f32
    %19 = vector.broadcast %cst_10 : f32 to vector<8x32xf32>
    %20 = arith.select %18, %4, %19 : vector<8x32xi1>, vector<8x32xf32>
    %cst_11 = arith.constant dense<0.000000e+00> : vector<8xf32>
    %21 = vector.multi_reduction <add>, %20, %cst_11 [1] : vector<8x32xf32> to vector<8xf32>
    %22 = vector.shape_cast %21 : vector<8xf32> to vector<8x1xf32>
    %cst_12 = arith.constant 0.000000e+00 : f32
    %23 = vector.shape_cast %6 : vector<1x32xf32> to vector<1x32xf32>
    %24 = vector.broadcast %23 : vector<1x32xf32> to vector<8x32xf32>
    %25 = vector.broadcast %cst_12 : f32 to vector<8x32xf32>
    %26 = arith.select %18, %24, %25 : vector<8x32xi1>, vector<8x32xf32>
    %cst_13 = arith.constant dense<0.000000e+00> : vector<8xf32>
    %27 = vector.multi_reduction <add>, %26, %cst_13 [1] : vector<8x32xf32> to vector<8xf32>
    %28 = vector.shape_cast %27 : vector<8xf32> to vector<8x1xf32>
    %29 = arith.subf %15, %22 : vector<8x1xf32>
    %cst_14 = arith.constant 1.000000e+00 : f32
    %30 = vector.broadcast %cst_14 : f32 to vector<8x1xf32>
    %31 = arith.addf %30, %28 : vector<8x1xf32>
    %32 = arith.mulf %29, %31 : vector<8x1xf32>
    %33 = vector.shape_cast %32 : vector<8x1xf32> to vector<1x8x1xf32>
    %cst_15 = arith.constant dense<0.000000e+00> : vector<1xf32>
    %34 = vector.multi_reduction <add>, %33, %cst_15 [1, 2] : vector<1x8x1xf32> to vector<1xf32>
    %35 = vector.shape_cast %34 : vector<1xf32> to vector<1x1x1xf32>
    %36 = vector.extract %35[0, 0, 0] : f32 from vector<1x1x1xf32>
    %37 = arith.mulf %36, %0 : f32
    %c0_i32 = arith.constant 0 : i32
    %38 = arith.cmpi eq, %arg0, %c0_i32 : i32
    %cst_16 = arith.constant 0.000000e+00 : f32
    %39 = arith.select %38, %37, %cst_16 : f32
    "tpu.region"() ({
      %alloca = memref.alloca() : memref<2x8x128xf32, #tpu.memory_space<vmem>>
      %50 = tpu.sem_alloc : memref<2x!tpu.dma_semaphore, #tpu.memory_space<semaphore_mem>>
      %c0_i32_23 = arith.constant 0 : i32
      %51 = tpu.assume_multiple %c0_i32_23, 8 : i32
      %c0_i32_24 = arith.constant 0 : i32
      %c0_i32_25 = arith.constant 0 : i32
      %c0_i32_26 = arith.constant 0 : i32
      %52 = tpu.memref_slice %arg5[%51, %c0_i32_26] : memref<8x128xf32, #tpu.memory_space<any>> -> memref<8x128xf32, #tpu.memory_space<any>>
      %c0_i32_27 = arith.constant 0 : i32
      %c0_i32_28 = arith.constant 0 : i32
      %53 = tpu.memref_slice %alloca[%c0_i32_24, %c0_i32_27, %c0_i32_28] : memref<2x8x128xf32, #tpu.memory_space<vmem>> -> memref<1x8x128xf32, #tpu.memory_space<vmem>>
      %54 = tpu.memref_squeeze %53 : memref<1x8x128xf32, #tpu.memory_space<vmem>> -> memref<8x128xf32, #tpu.memory_space<vmem>>
      %55 = tpu.memref_slice %50[%c0_i32_25] : memref<2x!tpu.dma_semaphore, #tpu.memory_space<semaphore_mem>> -> memref<1x!tpu.dma_semaphore, #tpu.memory_space<semaphore_mem>>
      %56 = tpu.memref_squeeze %55 : memref<1x!tpu.dma_semaphore, #tpu.memory_space<semaphore_mem>> -> memref<!tpu.dma_semaphore, #tpu.memory_space<semaphore_mem>>
      tpu.enqueue_dma source(%52 : memref<8x128xf32, #tpu.memory_space<any>>) target(%54 : memref<8x128xf32, #tpu.memory_space<vmem>>) target_semaphore(%56 : memref<!tpu.dma_semaphore, #tpu.memory_space<semaphore_mem>>)
      %c0_i32_29 = arith.constant 0 : i32
      %c1_i32 = arith.constant 1 : i32
      %57 = arith.muli %c0_i32_29, %c1_i32 : i32
      %c0_i32_30 = arith.constant 0 : i32
      %58 = arith.addi %c0_i32_30, %57 : i32
      %c1_i32_31 = arith.constant 1 : i32
      %59 = arith.andi %58, %c1_i32_31 : i32
      %c0_i32_32 = arith.constant 0 : i32
      %c0_i32_33 = arith.constant 0 : i32
      %60 = tpu.memref_slice %arg5[%c0_i32_32, %c0_i32_33] : memref<8x128xf32, #tpu.memory_space<any>> -> memref<8x128xf32, #tpu.memory_space<any>>
      %c0_i32_34 = arith.constant 0 : i32
      %c0_i32_35 = arith.constant 0 : i32
      %61 = tpu.memref_slice %alloca[%59, %c0_i32_34, %c0_i32_35] : memref<2x8x128xf32, #tpu.memory_space<vmem>> -> memref<1x8x128xf32, #tpu.memory_space<vmem>>
      %62 = tpu.memref_squeeze %61 : memref<1x8x128xf32, #tpu.memory_space<vmem>> -> memref<8x128xf32, #tpu.memory_space<vmem>>
      %63 = tpu.memref_slice %50[%59] : memref<2x!tpu.dma_semaphore, #tpu.memory_space<semaphore_mem>> -> memref<1x!tpu.dma_semaphore, #tpu.memory_space<semaphore_mem>>
      %64 = tpu.memref_squeeze %63 : memref<1x!tpu.dma_semaphore, #tpu.memory_space<semaphore_mem>> -> memref<!tpu.dma_semaphore, #tpu.memory_space<semaphore_mem>>
      tpu.wait_dma2 semaphore(%64 : memref<!tpu.dma_semaphore, #tpu.memory_space<semaphore_mem>>) src(%60 : memref<8x128xf32, #tpu.memory_space<any>>) dst(%62 : memref<8x128xf32, #tpu.memory_space<vmem>>)
      %c1_i32_36 = arith.constant 1 : i32
      %65 = arith.addi %58, %c1_i32_36 : i32
      %c1_i32_37 = arith.constant 1 : i32
      %66 = arith.cmpi slt, %65, %c1_i32_37 : i32
      %67 = arith.extui %66 : i1 to i32
      %c0_i32_38 = arith.constant 0 : i32
      %68 = arith.cmpi ne, %67, %c0_i32_38 : i32
      scf.if %68 {
        %c1_i32_47 = arith.constant 1 : i32
        %78 = arith.addi %58, %c1_i32_47 : i32
        %c1_i32_48 = arith.constant 1 : i32
        %79 = arith.subi %c1_i32_48, %59 : i32
        %c8_i32 = arith.constant 8 : i32
        %80 = arith.muli %78, %c8_i32 : i32
        %81 = tpu.assume_multiple %80, 8 : i32
        %c0_i32_49 = arith.constant 0 : i32
        %82 = tpu.memref_slice %arg5[%81, %c0_i32_49] : memref<8x128xf32, #tpu.memory_space<any>> -> memref<8x128xf32, #tpu.memory_space<any>>
        %c0_i32_50 = arith.constant 0 : i32
        %c0_i32_51 = arith.constant 0 : i32
        %83 = tpu.memref_slice %alloca[%79, %c0_i32_50, %c0_i32_51] : memref<2x8x128xf32, #tpu.memory_space<vmem>> -> memref<1x8x128xf32, #tpu.memory_space<vmem>>
        %84 = tpu.memref_squeeze %83 : memref<1x8x128xf32, #tpu.memory_space<vmem>> -> memref<8x128xf32, #tpu.memory_space<vmem>>
        %85 = tpu.memref_slice %50[%79] : memref<2x!tpu.dma_semaphore, #tpu.memory_space<semaphore_mem>> -> memref<1x!tpu.dma_semaphore, #tpu.memory_space<semaphore_mem>>
        %86 = tpu.memref_squeeze %85 : memref<1x!tpu.dma_semaphore, #tpu.memory_space<semaphore_mem>> -> memref<!tpu.dma_semaphore, #tpu.memory_space<semaphore_mem>>
        tpu.enqueue_dma source(%82 : memref<8x128xf32, #tpu.memory_space<any>>) target(%84 : memref<8x128xf32, #tpu.memory_space<vmem>>) target_semaphore(%86 : memref<!tpu.dma_semaphore, #tpu.memory_space<semaphore_mem>>)
      } else {
      }
      %69 = arith.index_cast %59 : i32 to index
      %c0_39 = arith.constant 0 : index
      %c0_40 = arith.constant 0 : index
      %70 = vector.load %alloca[%69, %c0_39, %c0_40] : memref<2x8x128xf32, #tpu.memory_space<vmem>>, vector<1x8x128xf32>
      %71 = vector.shape_cast %70 : vector<1x8x128xf32> to vector<8x128xf32>
      %72 = arith.mulf %71, %71 : vector<8x128xf32>
      %c0_41 = arith.constant 0 : index
      %c0_42 = arith.constant 0 : index
      %73 = vector.load %arg8[%c0_41, %c0_42] : memref<8x128xf32, #tpu.memory_space<vmem>>, vector<8x128xf32>
      %74 = vector.shape_cast %72 : vector<8x128xf32> to vector<1x8x128xf32>
      %cst_43 = arith.constant dense<0.000000e+00> : vector<8x128xf32>
      %75 = vector.multi_reduction <add>, %74, %cst_43 [0] : vector<1x8x128xf32> to vector<8x128xf32>
      %76 = arith.addf %73, %75 : vector<8x128xf32>
      %c0_44 = arith.constant 0 : index
      %c0_45 = arith.constant 0 : index
      %77 = vector.load %arg8[%c0_44, %c0_45] : memref<8x128xf32, #tpu.memory_space<vmem>>, vector<8x128xf32>
      tpu.vector_store %arg8[%c0_44, %c0_45], %76 {strides = array<i32>} : memref<8x128xf32, #tpu.memory_space<vmem>>, vector<8x128xf32>,
      %c1_i32_46 = arith.constant 1 : i32
      tpu.yield
    }) : () -> ()
    "tpu.region"() ({
      %alloca = memref.alloca() : memref<2x8x128xf32, #tpu.memory_space<vmem>>
      %50 = tpu.sem_alloc : memref<2x!tpu.dma_semaphore, #tpu.memory_space<semaphore_mem>>
      %c0_i32_23 = arith.constant 0 : i32
      %51 = tpu.assume_multiple %c0_i32_23, 8 : i32
      %c0_i32_24 = arith.constant 0 : i32
      %c0_i32_25 = arith.constant 0 : i32
      %c0_i32_26 = arith.constant 0 : i32
      %52 = tpu.memref_slice %arg6[%51, %c0_i32_26] : memref<8x128xf32, #tpu.memory_space<any>> -> memref<8x128xf32, #tpu.memory_space<any>>
      %c0_i32_27 = arith.constant 0 : i32
      %c0_i32_28 = arith.constant 0 : i32
      %53 = tpu.memref_slice %alloca[%c0_i32_24, %c0_i32_27, %c0_i32_28] : memref<2x8x128xf32, #tpu.memory_space<vmem>> -> memref<1x8x128xf32, #tpu.memory_space<vmem>>
      %54 = tpu.memref_squeeze %53 : memref<1x8x128xf32, #tpu.memory_space<vmem>> -> memref<8x128xf32, #tpu.memory_space<vmem>>
      %55 = tpu.memref_slice %50[%c0_i32_25] : memref<2x!tpu.dma_semaphore, #tpu.memory_space<semaphore_mem>> -> memref<1x!tpu.dma_semaphore, #tpu.memory_space<semaphore_mem>>
      %56 = tpu.memref_squeeze %55 : memref<1x!tpu.dma_semaphore, #tpu.memory_space<semaphore_mem>> -> memref<!tpu.dma_semaphore, #tpu.memory_space<semaphore_mem>>
      tpu.enqueue_dma source(%52 : memref<8x128xf32, #tpu.memory_space<any>>) target(%54 : memref<8x128xf32, #tpu.memory_space<vmem>>) target_semaphore(%56 : memref<!tpu.dma_semaphore, #tpu.memory_space<semaphore_mem>>)
      %c0_i32_29 = arith.constant 0 : i32
      %c1_i32 = arith.constant 1 : i32
      %57 = arith.muli %c0_i32_29, %c1_i32 : i32
      %c0_i32_30 = arith.constant 0 : i32
      %58 = arith.addi %c0_i32_30, %57 : i32
      %c1_i32_31 = arith.constant 1 : i32
      %59 = arith.andi %58, %c1_i32_31 : i32
      %c0_i32_32 = arith.constant 0 : i32
      %c0_i32_33 = arith.constant 0 : i32
      %60 = tpu.memref_slice %arg6[%c0_i32_32, %c0_i32_33] : memref<8x128xf32, #tpu.memory_space<any>> -> memref<8x128xf32, #tpu.memory_space<any>>
      %c0_i32_34 = arith.constant 0 : i32
      %c0_i32_35 = arith.constant 0 : i32
      %61 = tpu.memref_slice %alloca[%59, %c0_i32_34, %c0_i32_35] : memref<2x8x128xf32, #tpu.memory_space<vmem>> -> memref<1x8x128xf32, #tpu.memory_space<vmem>>
      %62 = tpu.memref_squeeze %61 : memref<1x8x128xf32, #tpu.memory_space<vmem>> -> memref<8x128xf32, #tpu.memory_space<vmem>>
      %63 = tpu.memref_slice %50[%59] : memref<2x!tpu.dma_semaphore, #tpu.memory_space<semaphore_mem>> -> memref<1x!tpu.dma_semaphore, #tpu.memory_space<semaphore_mem>>
      %64 = tpu.memref_squeeze %63 : memref<1x!tpu.dma_semaphore, #tpu.memory_space<semaphore_mem>> -> memref<!tpu.dma_semaphore, #tpu.memory_space<semaphore_mem>>
      tpu.wait_dma2 semaphore(%64 : memref<!tpu.dma_semaphore, #tpu.memory_space<semaphore_mem>>) src(%60 : memref<8x128xf32, #tpu.memory_space<any>>) dst(%62 : memref<8x128xf32, #tpu.memory_space<vmem>>)
      %c1_i32_36 = arith.constant 1 : i32
      %65 = arith.addi %58, %c1_i32_36 : i32
      %c1_i32_37 = arith.constant 1 : i32
      %66 = arith.cmpi slt, %65, %c1_i32_37 : i32
      %67 = arith.extui %66 : i1 to i32
      %c0_i32_38 = arith.constant 0 : i32
      %68 = arith.cmpi ne, %67, %c0_i32_38 : i32
      scf.if %68 {
        %c1_i32_47 = arith.constant 1 : i32
        %78 = arith.addi %58, %c1_i32_47 : i32
        %c1_i32_48 = arith.constant 1 : i32
        %79 = arith.subi %c1_i32_48, %59 : i32
        %c8_i32 = arith.constant 8 : i32
        %80 = arith.muli %78, %c8_i32 : i32
        %81 = tpu.assume_multiple %80, 8 : i32
        %c0_i32_49 = arith.constant 0 : i32
        %82 = tpu.memref_slice %arg6[%81, %c0_i32_49] : memref<8x128xf32, #tpu.memory_space<any>> -> memref<8x128xf32, #tpu.memory_space<any>>
        %c0_i32_50 = arith.constant 0 : i32
        %c0_i32_51 = arith.constant 0 : i32
        %83 = tpu.memref_slice %alloca[%79, %c0_i32_50, %c0_i32_51] : memref<2x8x128xf32, #tpu.memory_space<vmem>> -> memref<1x8x128xf32, #tpu.memory_space<vmem>>
        %84 = tpu.memref_squeeze %83 : memref<1x8x128xf32, #tpu.memory_space<vmem>> -> memref<8x128xf32, #tpu.memory_space<vmem>>
        %85 = tpu.memref_slice %50[%79] : memref<2x!tpu.dma_semaphore, #tpu.memory_space<semaphore_mem>> -> memref<1x!tpu.dma_semaphore, #tpu.memory_space<semaphore_mem>>
        %86 = tpu.memref_squeeze %85 : memref<1x!tpu.dma_semaphore, #tpu.memory_space<semaphore_mem>> -> memref<!tpu.dma_semaphore, #tpu.memory_space<semaphore_mem>>
        tpu.enqueue_dma source(%82 : memref<8x128xf32, #tpu.memory_space<any>>) target(%84 : memref<8x128xf32, #tpu.memory_space<vmem>>) target_semaphore(%86 : memref<!tpu.dma_semaphore, #tpu.memory_space<semaphore_mem>>)
      } else {
      }
      %69 = arith.index_cast %59 : i32 to index
      %c0_39 = arith.constant 0 : index
      %c0_40 = arith.constant 0 : index
      %70 = vector.load %alloca[%69, %c0_39, %c0_40] : memref<2x8x128xf32, #tpu.memory_space<vmem>>, vector<1x8x128xf32>
      %71 = vector.shape_cast %70 : vector<1x8x128xf32> to vector<8x128xf32>
      %72 = arith.mulf %71, %71 : vector<8x128xf32>
      %c0_41 = arith.constant 0 : index
      %c0_42 = arith.constant 0 : index
      %73 = vector.load %arg8[%c0_41, %c0_42] : memref<8x128xf32, #tpu.memory_space<vmem>>, vector<8x128xf32>
      %74 = vector.shape_cast %72 : vector<8x128xf32> to vector<1x8x128xf32>
      %cst_43 = arith.constant dense<0.000000e+00> : vector<8x128xf32>
      %75 = vector.multi_reduction <add>, %74, %cst_43 [0] : vector<1x8x128xf32> to vector<8x128xf32>
      %76 = arith.addf %73, %75 : vector<8x128xf32>
      %c0_44 = arith.constant 0 : index
      %c0_45 = arith.constant 0 : index
      %77 = vector.load %arg8[%c0_44, %c0_45] : memref<8x128xf32, #tpu.memory_space<vmem>>, vector<8x128xf32>
      tpu.vector_store %arg8[%c0_44, %c0_45], %76 {strides = array<i32>} : memref<8x128xf32, #tpu.memory_space<vmem>>, vector<8x128xf32>,
      %c1_i32_46 = arith.constant 1 : i32
      tpu.yield
    }) : () -> ()
    %cst_17 = arith.constant 5.000000e-01 : f32
    %40 = arith.mulf %cst_17, %1 : f32
    %c0_18 = arith.constant 0 : index
    %c0_19 = arith.constant 0 : index
    %41 = vector.load %arg8[%c0_18, %c0_19] : memref<8x128xf32, #tpu.memory_space<vmem>>, vector<8x128xf32>
    %42 = vector.shape_cast %41 : vector<8x128xf32> to vector<1x8x128xf32>
    %cst_20 = arith.constant dense<0.000000e+00> : vector<1xf32>
    %43 = vector.multi_reduction <add>, %42, %cst_20 [1, 2] : vector<1x8x128xf32> to vector<1xf32>
    %44 = vector.shape_cast %43 : vector<1xf32> to vector<1x1x1xf32>
    %45 = vector.extract %44[0, 0, 0] : f32 from vector<1x1x1xf32>
    %46 = arith.mulf %40, %45 : f32
    %47 = arith.subf %39, %46 : f32
    %48 = vector.broadcast %47 : f32 to vector<8x128xf32>
    %c0_21 = arith.constant 0 : index
    %c0_22 = arith.constant 0 : index
    %49 = vector.load %arg7[%c0_21, %c0_22] : memref<8x128xf32, #tpu.memory_space<vmem>>, vector<8x128xf32>
    tpu.vector_store %arg7[%c0_21, %c0_22], %48 {strides = array<i32>} : memref<8x128xf32, #tpu.memory_space<vmem>>, vector<8x128xf32>,
    return
  }
  func.func @transform_0(%arg0: i32) -> i32 {
    %c0_i32 = arith.constant 0 : i32
    %c0_i32_0 = arith.constant 0 : i32
    return %c0_i32 : i32
  }
  func.func @transform_1(%arg0: i32) -> (i32, i32) {
    %c0_i32 = arith.constant 0 : i32
    %c0_i32_0 = arith.constant 0 : i32
    %c0_i32_1 = arith.constant 0 : i32
    return %c0_i32, %c0_i32_0 : i32, i32
  }
  func.func @transform_2(%arg0: i32) -> (i32, i32) {
    %c0_i32 = arith.constant 0 : i32
    %c0_i32_0 = arith.constant 0 : i32
    %c0_i32_1 = arith.constant 0 : i32
    return %c0_i32, %c0_i32_0 : i32, i32
  }
  func.func @transform_3(%arg0: i32) -> (i32, i32) {
    %c0_i32 = arith.constant 0 : i32
    %c0_i32_0 = arith.constant 0 : i32
    %c0_i32_1 = arith.constant 0 : i32
    return %c0_i32, %c0_i32_0 : i32, i32
  }
  func.func @transform_6(%arg0: i32) -> (i32, i32) {
    %c0_i32 = arith.constant 0 : i32
    %c0_i32_0 = arith.constant 0 : i32
    return %arg0, %c0_i32 : i32, i32
  }
}

</mosaic_0001>

<llo_original>
// kernel: tpu_custom_call.1
$region0: #{tpu_custom_call.1}
  #allocation0 [shape = 'u32[]', space=smem, size = 0x4, offset = 0x4, fixed_abs, tag = 'smem constant byte address 0x4 - core index']
  #allocation1 [shape = 'u32[144,128]{1,0:T(1,128)}', space=vmem, size = 0x12000, scoped, tag = 'internal scratch']
  #allocation2 [shape = 'f32[8,128]{1,0:T(8,128)}', space=vmem, size = 0x1000, scoped, tag = 'scratch operand']
  #allocation11 [shape = 's32[]', space=sflag, size = 0x4, offset = 0, fixed_abs, tag = 'sflag constant byte address 0x0 - dummy sync flag']
  #allocation14 [shape = 's32[]', space=sflag, size = 0x4, offset = 0, fixed_abs, tag = 'sflag constant byte address 0x0 - dummy sync flag']
  %s0 = inlined_call_operand.hbm [shape: f32[2], index: 0, kind: input, shape index: {}]
  %s1 = inlined_call_operand.vmem [shape: f32[8,32], index: 1, kind: input, shape index: {}]
  %s2 = inlined_call_operand.vmem [shape: s32[8,1], index: 2, kind: input, shape index: {}]
  %s3 = inlined_call_operand.hbm [shape: f32[1,32], index: 3, kind: input, shape index: {}]
  %s4 = inlined_call_operand.vmem [shape: f32[8,128], index: 4, kind: input, shape index: {}]
  %s5 = inlined_call_operand.vmem [shape: f32[8,128], index: 5, kind: input, shape index: {}]
  %s6 = inlined_call_operand.hbm [shape: f32[8,128], index: 6, kind: output, shape index: {}]
  %s7 = sld [smem:[#allocation0]]
  $region104: #{tpu_custom_call.1} parent=0
    _
  %s9 = ssub.s32 1, %s7
  %s10 = scalar_select 0, %s9, %s7
  $region1: #{tpu_custom_call.1} parent=0
    #allocation3 [shape = 'u8[512]{0}', space=smem, size = 0x200, scoped, tag = 'input window, operand 0, single buffered']
    #allocation4 [shape = 's32[1]{0}', space=sflag, size = 0x4, scoped, tag = 'scoped memory for tpu_custom_call.1']
    #allocation5 [shape = 's32[1]{0}', space=sflag, size = 0x4, scoped, tag = 'scoped memory for tpu_custom_call.1']
    #allocation6 [shape = 's32[1]{0}', space=sflag, size = 0x4, scoped, tag = 'scoped memory for tpu_custom_call.1']
    #allocation7 [shape = 'u8[512]{0}', space=vmem, size = 0x400, scoped, tag = 'input window, operand 3, single buffered']
    #allocation8 [shape = 'u8[4096]{0}', space=vmem, size = 0x1000, scoped, tag = 'output window, operand 0, single buffered']
    %11 = vsyncpa [#allocation6], 0
    %12 = vsyncpa [#allocation4], 0
    %13 = vsyncpa [#allocation5], 0
    // Predicated region
    $region2: #{tpu_custom_call.1} parent=1 // pred_check
      _
    $region3: #{tpu_custom_call.1} parent=1 // pred_check_branch
      %15 = sbr.rel (0) target = $region5
    $region4: #{tpu_custom_call.1} parent=1 // pred_region
      %s17 = ssub.s32 16, 16
      %18 = vsyncadd [#allocation6], %s17
      %21 = dma.hbm_to_smem %s0, 16, [#allocation3], [#allocation6]
    $region5: #{tpu_custom_call.1} parent=1 // pred_fallthru
      _
    // Predicated region
    $region6: #{tpu_custom_call.1} parent=1 // pred_check
      _
    $region7: #{tpu_custom_call.1} parent=1 // pred_check_branch
      %23 = sbr.rel (0) target = $region9
    $region8: #{tpu_custom_call.1} parent=1 // pred_region
      _
    $region9: #{tpu_custom_call.1} parent=1 // pred_fallthru
      _
    // Predicated region
    $region10: #{tpu_custom_call.1} parent=1 // pred_check
      _
    $region11: #{tpu_custom_call.1} parent=1 // pred_check_branch
      %25 = sbr.rel (0) target = $region13
    $region12: #{tpu_custom_call.1} parent=1 // pred_region
      _
    $region13: #{tpu_custom_call.1} parent=1 // pred_fallthru
      _
    // Predicated region
    $region14: #{tpu_custom_call.1} parent=1 // pred_check
      _
    $region15: #{tpu_custom_call.1} parent=1 // pred_check_branch
      %27 = sbr.rel (0) target = $region17
    $region16: #{tpu_custom_call.1} parent=1 // pred_region
      %s29 = ssub.s32 16, 16
      %30 = vsyncadd [#allocation4], %s29
      %s32 = sshll.u32 [#allocation7], 4
      %s33 = int_to_ptr.vmem [resolvable:$true] %s32
      %35 = dma.hbm_to_vmem [thread:$0]  %s3, 16, %s33, [#allocation4]
    $region17: #{tpu_custom_call.1} parent=1 // pred_fallthru
      _
    // Predicated region
    $region18: #{tpu_custom_call.1} parent=1 // pred_check
      _
    $region19: #{tpu_custom_call.1} parent=1 // pred_check_branch
      %37 = sbr.rel (0) target = $region21
    $region20: #{tpu_custom_call.1} parent=1 // pred_region
      %38 = dma.done [#allocation6], 16
    $region21: #{tpu_custom_call.1} parent=1 // pred_fallthru
      _
    // Predicated region
    $region22: #{tpu_custom_call.1} parent=1 // pred_check
      _
    $region23: #{tpu_custom_call.1} parent=1 // pred_check_branch
      %40 = sbr.rel (0) target = $region25
    $region24: #{tpu_custom_call.1} parent=1 // pred_region
      %41 = dma.done [#allocation4], 16
    $region25: #{tpu_custom_call.1} parent=1 // pred_fallthru
      _
    %42 = sfence
    %s43 = sld [smem:[#allocation3]]
    %s44 = sld [smem:[#allocation3 + $0x1]]
    %45 = vst [vmem:[#allocation2] sm:$0xff] 0.0
    %v46 = vld [vmem:[%s1] sm:$0xff]
    %v47 = vld [vmem:[%s2] sm:$0xff]
    %v48 = vld [vmem:[#allocation7] sm:$0x1]
    %vm49 = vcmask 261120
    %v50 = vsel %vm49, %v46, -inf
    %51 = vmax.xlane.f32.xlu0 %v50
    %v52 = vpop.xlane.xlu0 %51
    %v53 = vsub.f32 %v46, %v52
    %v54 = vmul.f32 %v53, 1.442695
    %v55 = vpow.pop %v54
    %v56 = vsel %vm49, %v55, 0.0
    %57 = vadd.xlane.f32.xlu0 %v56
    %v58 = vpop.xlane.xlu0 %57
    %v59 = vlog2.pop %v58
    %v60 = vmul.f32 %v59, 0.6931472
    %v61 = vadd.f32 %v52, %v60
    %v62 = vlaneseq
    %v63 = vand.u32 %v62, 127
    %64 = vset.pattern.permute.xlu0 0
    %65 = vperm.xlu0 %64, %v47
    %v66 = vpop.permute.xlu0 %65
    %vm67 = vcmp.eq.s32.totalorder %v63, %v66
    %v68 = vsel %vm67, %v46, 0.0
    %v69 = vsel %vm49, %v68, 0.0
    %70 = vadd.xlane.f32.xlu0 %v69
    %v71 = vpop.xlane.xlu0 %70
    %v73 = vlaneseq
    %v74 = vshrl.u32 %v73, 7
    %v75 = vsub.s32 0, %v74
    %v76 = vrot.slane %v48, %v75
    %v78 = vsel %vm67, %v76, 0.0
    %v79 = vsel %vm49, %v78, 0.0
    %80 = vadd.xlane.f32.xlu0 %v79
    %v81 = vpop.xlane.xlu0 %80
    %v82 = vsub.f32 %v61, %v71
    %v83 = vadd.f32 %v81, 1.0
    %v84 = vmul.f32 %v82, %v83
    %vm85 = vcmask 7168
    %v86 = vsel %vm85, %v84, 0.0
    %87 = vadd.xlane.f32.xlu0 %v86
    %v88 = vpop.xlane.xlu0 %87
    %v89 = vrot.slane %v88, 4
    %v90 = vadd.f32 %v88, %v89
    %v91 = vrot.slane %v90, 2
    %v92 = vadd.f32 %v90, %v91
    %v93 = vrot.slane %v92, 1
    %v94 = vadd.f32 %v92, %v93
    %s95 = vtos %v94
    %s96 = smul.f32 %s95, %s43
    %p97 = scmp.eq.s32.totalorder 0, 0
    %s98 = scalar_select %p97, %s96, 0.0
    $region26: #{tpu_custom_call.1} parent=1
      #allocation9 [shape = 'u8[8192]{0}', space=vmem, size = 0x2000, scoped, tag = 'scoped memory for tpu_custom_call.1']
      #allocation10 [shape = 's32[2]{0}', space=sflag, size = 0x8, scoped, tag = 'scoped memory for tpu_custom_call.1']
      %p100 = scmp.lt.u32.totalorder 8, 8
      %p101 = pneg %p100
      // Predicated region
      $region27: #{tpu_custom_call.1} parent=26 // pred_check
        _
      $region28: #{tpu_custom_call.1} parent=26 // pred_check_branch
        %103 = sbr.rel (%p100) target = $region30
      $region29: #{tpu_custom_call.1} parent=26 // pred_region
        %s118 = sand.u32 8, 7
        %p119 = scmp.eq.s32.totalorder %s118, 0
        // Predicated region
        $region42: #{tpu_custom_call.1} parent=29 // pred_check
          %p120 = pneg %p119
        $region43: #{tpu_custom_call.1} parent=29 // pred_check_branch
          %122 = sbr.rel (%p120) target = $region45
        $region44: #{tpu_custom_call.1} parent=29 // pred_region
          loop: start=0, step=1, limit=1
          $region46: #{tpu_custom_call.1} parent=44 // loop_pre_header
            _
          $region47: #{tpu_custom_call.1} parent=44 // loop_header
            %s124 = sphi 0, %s128
            %p125 = scmp.ge.s32.totalorder %s124, 1
            %s129 = sphi %s4, %s4
            %s130 = sphi [#allocation9], [#allocation9]
          $region48: #{tpu_custom_call.1} parent=44 // loop_header_branch
            %127 = sbr.rel (%p125) target = $region52
          $region49: #{tpu_custom_call.1} parent=44 // loop_body
            %v131 = vld [vmem:[%s129] sm:$0xff]
            %132 = vst [vmem:[%s130] sm:$0xff] %v131
          $region50: #{tpu_custom_call.1} parent=44 // loop_footer
            %s128 = sadd.s32 1, %s124
          $region51: #{tpu_custom_call.1} parent=44 // loop_footer_branch
            %123 = sbr.rel target = $region47
          $region52: #{tpu_custom_call.1} parent=44 // loop_exit
            _
        $region45: #{tpu_custom_call.1} parent=29 // pred_fallthru
          _
        %p133 = pneg %p119
        // Predicated region
        $region53: #{tpu_custom_call.1} parent=29 // pred_check
          _
        $region54: #{tpu_custom_call.1} parent=29 // pred_check_branch
          %135 = sbr.rel (%p119) target = $region56
        $region55: #{tpu_custom_call.1} parent=29 // pred_region
          %s136 = sand.u32 8, 7
        $region56: #{tpu_custom_call.1} parent=29 // pred_fallthru
          _
      $region30: #{tpu_custom_call.1} parent=26 // pred_fallthru
        _
      // Predicated region
      $region31: #{tpu_custom_call.1} parent=26 // pred_check
        %p104 = pneg %p100
      $region32: #{tpu_custom_call.1} parent=26 // pred_check_branch
        %106 = sbr.rel (%p104) target = $region34
      $region33: #{tpu_custom_call.1} parent=26 // pred_region
        %s107 = sshllo.u32 0, 8
        loop: start=0, step=1, limit=1
        $region35: #{tpu_custom_call.1} parent=33 // loop_pre_header
          _
        $region36: #{tpu_custom_call.1} parent=33 // loop_header
          %s109 = sphi 0, %s113
          %p110 = scmp.ge.s32.totalorder %s109, 1
          %s114 = sphi %s4, %s4
          %s115 = sphi [#allocation9], [#allocation9]
        $region37: #{tpu_custom_call.1} parent=33 // loop_header_branch
          %112 = sbr.rel (%p110) target = $region41
        $region38: #{tpu_custom_call.1} parent=33 // loop_body
          %v116 = vld [vmem:[%s114] sm:%s107]
          %117 = vst [vmem:[%s115] sm:%s107] %v116
        $region39: #{tpu_custom_call.1} parent=33 // loop_footer
          %s113 = sadd.s32 1, %s109
        $region40: #{tpu_custom_call.1} parent=33 // loop_footer_branch
          %108 = sbr.rel target = $region36
        $region41: #{tpu_custom_call.1} parent=33 // loop_exit
          _
      $region34: #{tpu_custom_call.1} parent=26 // pred_fallthru
        _
      // Predicated region
      $region57: #{tpu_custom_call.1} parent=26 // pred_check
        _
      $region58: #{tpu_custom_call.1} parent=26 // pred_check_branch
        %139 = sbr.rel (0) target = $region60
      $region59: #{tpu_custom_call.1} parent=26 // pred_region
        %140 = vsyncadd [#allocation10], 128
      $region60: #{tpu_custom_call.1} parent=26 // pred_fallthru
        _
      %s141 = smul.u32 8, 1
      %s142 = sshll.u32 %s141, 4
      %143 = dma.done [#allocation10], %s142
      %v144 = vld [vmem:[#allocation9] sm:$0xff]
      %v145 = vmul.f32 %v144, %v144
      %v146 = vld [vmem:[#allocation2] sm:$0xff]
      %v147 = vadd.f32 %v145, 0.0
      %v148 = vadd.f32 %v146, %v147
      %149 = vst [vmem:[#allocation2] sm:$0xff] %v148
    $region61: #{tpu_custom_call.1} parent=1
      #allocation12 [shape = 'u8[8192]{0}', space=vmem, size = 0x2000, scoped, tag = 'scoped memory for tpu_custom_call.1']
      #allocation13 [shape = 's32[2]{0}', space=sflag, size = 0x8, scoped, tag = 'scoped memory for tpu_custom_call.1']
      %p151 = scmp.lt.u32.totalorder 8, 8
      %p152 = pneg %p151
      // Predicated region
      $region62: #{tpu_custom_call.1} parent=61 // pred_check
        _
      $region63: #{tpu_custom_call.1} parent=61 // pred_check_branch
        %154 = sbr.rel (%p151) target = $region65
      $region64: #{tpu_custom_call.1} parent=61 // pred_region
        %s169 = sand.u32 8, 7
        %p170 = scmp.eq.s32.totalorder %s169, 0
        // Predicated region
        $region77: #{tpu_custom_call.1} parent=64 // pred_check
          %p171 = pneg %p170
        $region78: #{tpu_custom_call.1} parent=64 // pred_check_branch
          %173 = sbr.rel (%p171) target = $region80
        $region79: #{tpu_custom_call.1} parent=64 // pred_region
          loop: start=0, step=1, limit=1
          $region81: #{tpu_custom_call.1} parent=79 // loop_pre_header
            _
          $region82: #{tpu_custom_call.1} parent=79 // loop_header
            %s175 = sphi 0, %s179
            %p176 = scmp.ge.s32.totalorder %s175, 1
            %s180 = sphi %s5, %s5
            %s181 = sphi [#allocation12], [#allocation12]
          $region83: #{tpu_custom_call.1} parent=79 // loop_header_branch
            %178 = sbr.rel (%p176) target = $region87
          $region84: #{tpu_custom_call.1} parent=79 // loop_body
            %v182 = vld [vmem:[%s180] sm:$0xff]
            %183 = vst [vmem:[%s181] sm:$0xff] %v182
          $region85: #{tpu_custom_call.1} parent=79 // loop_footer
            %s179 = sadd.s32 1, %s175
          $region86: #{tpu_custom_call.1} parent=79 // loop_footer_branch
            %174 = sbr.rel target = $region82
          $region87: #{tpu_custom_call.1} parent=79 // loop_exit
            _
        $region80: #{tpu_custom_call.1} parent=64 // pred_fallthru
          _
        %p184 = pneg %p170
        // Predicated region
        $region88: #{tpu_custom_call.1} parent=64 // pred_check
          _
        $region89: #{tpu_custom_call.1} parent=64 // pred_check_branch
          %186 = sbr.rel (%p170) target = $region91
        $region90: #{tpu_custom_call.1} parent=64 // pred_region
          %s187 = sand.u32 8, 7
        $region91: #{tpu_custom_call.1} parent=64 // pred_fallthru
          _
      $region65: #{tpu_custom_call.1} parent=61 // pred_fallthru
        _
      // Predicated region
      $region66: #{tpu_custom_call.1} parent=61 // pred_check
        %p155 = pneg %p151
      $region67: #{tpu_custom_call.1} parent=61 // pred_check_branch
        %157 = sbr.rel (%p155) target = $region69
      $region68: #{tpu_custom_call.1} parent=61 // pred_region
        %s158 = sshllo.u32 0, 8
        loop: start=0, step=1, limit=1
        $region70: #{tpu_custom_call.1} parent=68 // loop_pre_header
          _
        $region71: #{tpu_custom_call.1} parent=68 // loop_header
          %s160 = sphi 0, %s164
          %p161 = scmp.ge.s32.totalorder %s160, 1
          %s165 = sphi %s5, %s5
          %s166 = sphi [#allocation12], [#allocation12]
        $region72: #{tpu_custom_call.1} parent=68 // loop_header_branch
          %163 = sbr.rel (%p161) target = $region76
        $region73: #{tpu_custom_call.1} parent=68 // loop_body
          %v167 = vld [vmem:[%s165] sm:%s158]
          %168 = vst [vmem:[%s166] sm:%s158] %v167
        $region74: #{tpu_custom_call.1} parent=68 // loop_footer
          %s164 = sadd.s32 1, %s160
        $region75: #{tpu_custom_call.1} parent=68 // loop_footer_branch
          %159 = sbr.rel target = $region71
        $region76: #{tpu_custom_call.1} parent=68 // loop_exit
          _
      $region69: #{tpu_custom_call.1} parent=61 // pred_fallthru
        _
      // Predicated region
      $region92: #{tpu_custom_call.1} parent=61 // pred_check
        _
      $region93: #{tpu_custom_call.1} parent=61 // pred_check_branch
        %190 = sbr.rel (0) target = $region95
      $region94: #{tpu_custom_call.1} parent=61 // pred_region
        %191 = vsyncadd [#allocation13], 128
      $region95: #{tpu_custom_call.1} parent=61 // pred_fallthru
        _
      %s192 = smul.u32 8, 1
      %s193 = sshll.u32 %s192, 4
      %194 = dma.done [#allocation13], %s193
      %v195 = vld [vmem:[#allocation12] sm:$0xff]
      %v196 = vmul.f32 %v195, %v195
      %v197 = vld [vmem:[#allocation2] sm:$0xff]
      %v198 = vadd.f32 %v196, 0.0
      %v199 = vadd.f32 %v197, %v198
      %200 = vst [vmem:[#allocation2] sm:$0xff] %v199
    %s201 = smul.f32 %s44, 0.5
    %v202 = vld [vmem:[#allocation2] sm:$0xff]
    %203 = vadd.xlane.f32.xlu0 %v202
    %v204 = vpop.xlane.xlu0 %203
    %v205 = vrot.slane %v204, 4
    %v206 = vadd.f32 %v204, %v205
    %v207 = vrot.slane %v206, 2
    %v208 = vadd.f32 %v206, %v207
    %v209 = vrot.slane %v208, 1
    %v210 = vadd.f32 %v208, %v209
    %s211 = vtos %v210
    %s212 = smul.f32 %s201, %s211
    %s213 = ssub.f32 %s98, %s212
    %v214 = vstv %s213
    %215 = vst [vmem:[#allocation8] sm:$0xff] %v214
    // Predicated region
    $region96: #{tpu_custom_call.1} parent=1 // pred_check
      _
    $region97: #{tpu_custom_call.1} parent=1 // pred_check_branch
      %217 = sbr.rel (0) target = $region99
    $region98: #{tpu_custom_call.1} parent=1 // pred_region
      %s219 = ssub.s32 128, 128
      %220 = vsyncadd [#allocation5], %s219
      %s222 = sshll.u32 [#allocation8], 4
      %s223 = int_to_ptr.vmem [resolvable:$true] %s222
      %225 = dma.vmem_to_hbm [thread:$0]  %s223, 128, %s6, [#allocation5]
    $region99: #{tpu_custom_call.1} parent=1 // pred_fallthru
      _
    // Predicated region
    $region100: #{tpu_custom_call.1} parent=1 // pred_check
      _
    $region101: #{tpu_custom_call.1} parent=1 // pred_check_branch
      %227 = sbr.rel (0) target = $region103
    $region102: #{tpu_custom_call.1} parent=1 // pred_region
      %228 = dma.done [#allocation5], 128
    $region103: #{tpu_custom_call.1} parent=1 // pred_fallthru
      _
    %229 = vsyncpa [#allocation4], 1
    %230 = vsyncpa [#allocation5], 1
    %231 = vsyncpa [#allocation6], 1

</llo_original>
